<compile_context>
chip_gen: v5e
topology: v5e:2x2
jax: 0.10.0
libtpu: 0.0.40
codegen_flags: <defaults>
</compile_context>

<pallas_src>
import jax
import jax.numpy as jnp
from jax import lax
from jax.experimental import pallas as pl
from jax.experimental.pallas import tpu as pltpu


def _round_up(x, m):
    return ((x + m - 1) // m) * m


def _make_mlp_kernel(num_hidden):
    """Kernel over one batch tile.

    Ref order: x_ref, (w_i, b_i) * num_hidden, w_last_t, b_last_t, out_ref.
      x_ref      : (TB, D)        f32
      w_i        : (D_i, H_i)     f32 or bf16 (MXU operand dtype)
      b_i        : (1, H_i)       f32
      w_last_t   : (O_sub, H)     transposed + sublane-padded last weight
      b_last_t   : (O_sub, 1)     f32
      out_ref    : (O_sub, TB)    lane-dense over batch
    """

    def kernel(x_ref, *refs):
        *param_refs, out_ref = refs
        h = x_ref[...]                                        # (TB, D) f32
        for i in range(num_hidden):
            w = param_refs[2 * i][...]
            b = param_refs[2 * i + 1][...]
            h = jnp.dot(h.astype(w.dtype), w,
                        preferred_element_type=jnp.float32) + b
            h = jnp.maximum(h, 0.0)                           # relu (f32 VPU)
        w_last = param_refs[2 * num_hidden][...]              # (O_sub, H)
        b_last = param_refs[2 * num_hidden + 1][...]          # (O_sub, 1)
        # Last dot computed transposed: (O_sub, H) x (TB, H)^T -> (O_sub, TB).
        # Keeps the output store lane-dense over the batch dimension instead
        # of a masked, <128-lane store over the (tiny) output dimension.
        out_t = lax.dot_general(
            w_last, h.astype(w_last.dtype),
            dimension_numbers=(((1,), (1,)), ((), ())),
            preferred_element_type=jnp.float32)
        out_ref[...] = out_t + b_last                         # identity output act.

    return kernel


def mlp_forward(x, params, *, tile_batch=512, matmul_dtype=None):
    """params: list of (w, b); w is (in_features, out_features), b is (1, out).
    The last pair is `last_fc`.  Computes y = relu-MLP(x) @ W_last + b_last."""
    B, D = x.shape
    num_hidden = len(params) - 1
    w_last, b_last = params[-1]
    O = w_last.shape[1]

    widths = [D] + [w.shape[1] for (w, _) in params]

    # bf16 MXU operands only pay off at production widths; keep f32 at toy
    # sizes for parity with the f32 reference.
    if matmul_dtype is None:
        matmul_dtype = jnp.bfloat16 if max(widths) >= 512 else jnp.float32

    # ---- batch tiling -------------------------------------------------------
    B8 = _round_up(B, 8)
    if B8 < 256:
        # Tiny batch: one full-batch tile (block == full dims -> no (8,128)
        # alignment issue, no wasted 128-row padding).
        TB = B8
    else:
        # Big batch: 128-multiple tiles (lane-dense transposed output, fills
        # the MXU M dimension), capped by tile_batch.
        TB = max(128, (min(tile_batch, B8) // 128) * 128)
        # Guarantee >= 2 grid steps so the "parallel" axis can use both
        # TensorCores on v7x.
        if _round_up(B, TB) // TB < 2:
            TB = max(128, (TB // 2) // 128 * 128)
    B_pad = _round_up(B, TB)
    x_p = x if B_pad == B else jnp.pad(x, ((0, B_pad - B), (0, 0)))

    # ---- last layer: stored transposed, output dim padded to sublane granule
    O_sub = _round_up(O, 8)
    w_last_t = jnp.pad(w_last.T, ((0, O_sub - O), (0, 0))).astype(matmul_dtype)
    b_last_t = jnp.pad(b_last.reshape(O, 1), ((0, O_sub - O), (0, 0)))

    flat = []
    for (w, b) in params[:-1]:
        flat += [w.astype(matmul_dtype), b]      # biases stay f32
    flat += [w_last_t, b_last_t]

    def const_spec(a):
        nd = a.ndim
        # Whole-array block, constant index map -> VMEM-resident across steps.
        return pl.BlockSpec(a.shape, lambda i, _nd=nd: (0,) * _nd)

    # ---- cost estimate & VMEM budget ---------------------------------------
    param_bytes = sum(int(a.size) * a.dtype.itemsize for a in flat)
    flops = 2 * B_pad * sum(widths[i] * widths[i + 1]
                            for i in range(len(widths) - 1))
    bytes_accessed = (int(x_p.size) * x_p.dtype.itemsize
                      + param_bytes
                      + O_sub * B_pad * 4)
    cost = pl.CostEstimate(flops=flops, transcendentals=0,
                           bytes_accessed=bytes_accessed)

    act_bytes = 4 * TB * max(widths)                    # largest live activation
    tile_io_bytes = 4 * TB * (D + O_sub)                # per-step in/out blocks
    vmem_limit = int(min(100 * 2 ** 20,
                         max(32 * 2 ** 20,
                             2 * param_bytes + 4 * (act_bytes + tile_io_bytes))))

    grid = (B_pad // TB,)
    out_t = pl.pallas_call(
        _make_mlp_kernel(num_hidden),
        out_shape=jax.ShapeDtypeStruct((O_sub, B_pad), jnp.float32),
        grid=grid,
        in_specs=[pl.BlockSpec((TB, D), lambda i: (i, 0))]
        + [const_spec(a) for a in flat],
        out_specs=pl.BlockSpec((O_sub, TB), lambda i: (0, i)),
        compiler_params=pltpu.CompilerParams(
            dimension_semantics=("parallel",),
            vmem_limit_bytes=vmem_limit,
        ),
        cost_estimate=cost,
    )(x_p, *flat)

    # Small lane-dense slab back to (B, O): layout plumbing, not compute.
    return out_t[:O, :B].T


# ---------------------------------------------------------------------------
# Parameter init matching the PyTorch Mlp defaults
#   hidden weights: fanin_init  (uniform +/- 1/sqrt(fan_in))
#   hidden biases : filled with b_init_value = 0.1
#   last_fc weight/bias: uniform +/- init_w = 0.003
# Weights are stored as (in_features, out_features) so the kernel computes
# x @ W + b, equivalent to PyTorch's x @ W.T + b.
# ---------------------------------------------------------------------------
def _fanin_init(key, fan_in, fan_out):
    bound = 1.0 / (fan_in ** 0.5)
    return jax.random.uniform(key, (fan_in, fan_out), jnp.float32, -bound, bound)


def init_mlp_params(key, input_size, hidden_sizes, output_size,
                    init_w=0.003, b_init_value=0.1):
    params = []
    in_size = input_size
    keys = jax.random.split(key, len(hidden_sizes) + 2)
    for i, h in enumerate(hidden_sizes):
        w = _fanin_init(keys[i], in_size, h)
        b = jnp.full((1, h), b_init_value, jnp.float32)
        params.append((w, b))
        in_size = h
    w = jax.random.uniform(keys[-2], (in_size, output_size), jnp.float32,
                           -init_w, init_w)
    b = jax.random.uniform(keys[-1], (1, output_size), jnp.float32,
                           -init_w, init_w)
    params.append((w, b))
    return params


def _reference_forward(x, params):
    h = x
    for (w, b) in params[:-1]:
        h = jnp.maximum(h @ w + b, 0.0)
    w, b = params[-1]
    return h @ w + b


# TODO(synk): layer_norm=True branch (nn.LayerNorm between the hidden Linear
# and ReLU) is not implemented; only the default Mlp(layer_norm=False) forward
# is.  return_preactivations=True would simply return the same tensor twice
# (identity output activation).


if __name__ == "__main__":
    input_size, hidden_sizes, output_size = 24, (32, 32), 1
    key = jax.random.PRNGKey(0)
    k_x, k_p = jax.random.split(key)
    params = init_mlp_params(k_p, input_size, hidden_sizes, output_size)
    fwd = jax.jit(mlp_forward)

    # Tiny batch (not a multiple of 8): single full-batch tile path.
    batch_small = 10
    x_small = jax.random.normal(k_x, (batch_small, input_size), jnp.float32)
    out_small = fwd(x_small, params)
    jax.block_until_ready(out_small)
    ref_small = _reference_forward(x_small, params)
    assert out_small.shape == (batch_small, output_size)
    assert jnp.allclose(out_small, ref_small, atol=1e-4, rtol=1e-4), float(
        jnp.max(jnp.abs(out_small - ref_small)))

    # Larger batch: exercises the 128-multiple-tile, multi-step (dual-TC) path.
    batch_big = 300
    x_big = jax.random.normal(jax.random.PRNGKey(1),
                              (batch_big, input_size), jnp.float32)
    out_big = fwd(x_big, params)
    jax.block_until_ready(out_big)
    ref_big = _reference_forward(x_big, params)
    assert out_big.shape == (batch_big, output_size)
    assert jnp.allclose(out_big, ref_big, atol=1e-4, rtol=1e-4), float(
        jnp.max(jnp.abs(out_big - ref_big)))

    print("KERNEL_OK")
</pallas_src>

<mosaic_0001>
module attributes {stable_mosaic.version = 11 : i64} {
  func.func @kernel(%arg0: i32, %arg1: memref<16x24xf32, #tpu.memory_space<vmem>>, %arg2: memref<24x32xf32, #tpu.memory_space<vmem>>, %arg3: memref<1x32xf32, #tpu.memory_space<vmem>>, %arg4: memref<32x32xf32, #tpu.memory_space<vmem>>, %arg5: memref<1x32xf32, #tpu.memory_space<vmem>>, %arg6: memref<8x32xf32, #tpu.memory_space<vmem>>, %arg7: memref<8x1xf32, #tpu.memory_space<vmem>>, %arg8: memref<8x16xf32, #tpu.memory_space<vmem>>) attributes {dimension_semantics = [#tpu.dimension_semantics<parallel>], iteration_bounds = array<i64: 1>, scalar_prefetch = 0 : i64, scratch_operands = 0 : i64, tpu.core_type = #tpu.core_type<tc>, window_params = [{transform_indices = @transform_0, window_bounds = array<i64: 16, 24>}, {pipeline_mode = #tpu.pipeline_mode<synchronous>, transform_indices = @transform_1, window_bounds = array<i64: 24, 32>}, {pipeline_mode = #tpu.pipeline_mode<synchronous>, transform_indices = @transform_2, window_bounds = array<i64: 1, 32>}, {pipeline_mode = #tpu.pipeline_mode<synchronous>, transform_indices = @transform_3, window_bounds = array<i64: 32, 32>}, {pipeline_mode = #tpu.pipeline_mode<synchronous>, transform_indices = @transform_4, window_bounds = array<i64: 1, 32>}, {pipeline_mode = #tpu.pipeline_mode<synchronous>, transform_indices = @transform_5, window_bounds = array<i64: 8, 32>}, {pipeline_mode = #tpu.pipeline_mode<synchronous>, transform_indices = @transform_6, window_bounds = array<i64: 8, 1>}, {transform_indices = @transform_7, window_bounds = array<i64: 8, 16>}]} {
    %c0 = arith.constant 0 : index
    %c0_0 = arith.constant 0 : index
    %0 = vector.load %arg1[%c0, %c0_0] : memref<16x24xf32, #tpu.memory_space<vmem>>, vector<16x24xf32>
    %c0_1 = arith.constant 0 : index
    %c0_2 = arith.constant 0 : index
    %1 = vector.load %arg2[%c0_1, %c0_2] : memref<24x32xf32, #tpu.memory_space<vmem>>, vector<24x32xf32>
    %c0_3 = arith.constant 0 : index
    %c0_4 = arith.constant 0 : index
    %2 = vector.load %arg3[%c0_3, %c0_4] : memref<1x32xf32, #tpu.memory_space<vmem>>, vector<1x32xf32>
    %cst = arith.constant dense<0.000000e+00> : vector<16x32xf32>
    %3 = tpu.matmul %0, %1, %cst {dimension_numbers = #tpu.dot_dimension_numbers<[1], [0], [0], [1], [0, 0, 1, 1], [], []>} : vector<16x24xf32>, vector<24x32xf32>, vector<16x32xf32> -> vector<16x32xf32>
    %4 = vector.broadcast %2 : vector<1x32xf32> to vector<16x32xf32>
    %5 = arith.addf %3, %4 : vector<16x32xf32>
    %cst_5 = arith.constant 0.000000e+00 : f32
    %6 = vector.broadcast %cst_5 : f32 to vector<16x32xf32>
    %7 = arith.maximumf %5, %6 : vector<16x32xf32>
    %c0_6 = arith.constant 0 : index
    %c0_7 = arith.constant 0 : index
    %8 = vector.load %arg4[%c0_6, %c0_7] : memref<32x32xf32, #tpu.memory_space<vmem>>, vector<32x32xf32>
    %c0_8 = arith.constant 0 : index
    %c0_9 = arith.constant 0 : index
    %9 = vector.load %arg5[%c0_8, %c0_9] : memref<1x32xf32, #tpu.memory_space<vmem>>, vector<1x32xf32>
    %cst_10 = arith.constant dense<0.000000e+00> : vector<16x32xf32>
    %10 = tpu.matmul %7, %8, %cst_10 {dimension_numbers = #tpu.dot_dimension_numbers<[1], [0], [0], [1], [0, 0, 1, 1], [], []>} : vector<16x32xf32>, vector<32x32xf32>, vector<16x32xf32> -> vector<16x32xf32>
    %11 = vector.broadcast %9 : vector<1x32xf32> to vector<16x32xf32>
    %12 = arith.addf %10, %11 : vector<16x32xf32>
    %cst_11 = arith.constant 0.000000e+00 : f32
    %13 = vector.broadcast %cst_11 : f32 to vector<16x32xf32>
    %14 = arith.maximumf %12, %13 : vector<16x32xf32>
    %c0_12 = arith.constant 0 : index
    %c0_13 = arith.constant 0 : index
    %15 = vector.load %arg6[%c0_12, %c0_13] : memref<8x32xf32, #tpu.memory_space<vmem>>, vector<8x32xf32>
    %c0_14 = arith.constant 0 : index
    %c0_15 = arith.constant 0 : index
    %16 = vector.load %arg7[%c0_14, %c0_15] : memref<8x1xf32, #tpu.memory_space<vmem>>, vector<8x1xf32>
    %cst_16 = arith.constant dense<0.000000e+00> : vector<8x16xf32>
    %17 = tpu.matmul %15, %14, %cst_16 {dimension_numbers = #tpu.dot_dimension_numbers<[1], [1], [0], [0], [0, 0, 1, 0], [], []>} : vector<8x32xf32>, vector<16x32xf32>, vector<8x16xf32> -> vector<8x16xf32>
    %18 = vector.broadcast %16 : vector<8x1xf32> to vector<8x16xf32>
    %19 = arith.addf %17, %18 : vector<8x16xf32>
    %c0_17 = arith.constant 0 : index
    %c0_18 = arith.constant 0 : index
    %20 = vector.load %arg8[%c0_17, %c0_18] : memref<8x16xf32, #tpu.memory_space<vmem>>, vector<8x16xf32>
    tpu.vector_store %arg8[%c0_17, %c0_18], %19 {strides = array<i32>} : memref<8x16xf32, #tpu.memory_space<vmem>>, vector<8x16xf32>,
    return
  }
  func.func @transform_0(%arg0: i32) -> (i32, i32) {
    %c0_i32 = arith.constant 0 : i32
    %c0_i32_0 = arith.constant 0 : i32
    return %arg0, %c0_i32 : i32, i32
  }
  func.func @transform_1(%arg0: i32) -> (i32, i32) {
    %c0_i32 = arith.constant 0 : i32
    %c0_i32_0 = arith.constant 0 : i32
    %c0_i32_1 = arith.constant 0 : i32
    return %c0_i32, %c0_i32_0 : i32, i32
  }
  func.func @transform_2(%arg0: i32) -> (i32, i32) {
    %c0_i32 = arith.constant 0 : i32
    %c0_i32_0 = arith.constant 0 : i32
    %c0_i32_1 = arith.constant 0 : i32
    return %c0_i32, %c0_i32_0 : i32, i32
  }
  func.func @transform_3(%arg0: i32) -> (i32, i32) {
    %c0_i32 = arith.constant 0 : i32
    %c0_i32_0 = arith.constant 0 : i32
    %c0_i32_1 = arith.constant 0 : i32
    return %c0_i32, %c0_i32_0 : i32, i32
  }
  func.func @transform_4(%arg0: i32) -> (i32, i32) {
    %c0_i32 = arith.constant 0 : i32
    %c0_i32_0 = arith.constant 0 : i32
    %c0_i32_1 = arith.constant 0 : i32
    return %c0_i32, %c0_i32_0 : i32, i32
  }
  func.func @transform_5(%arg0: i32) -> (i32, i32) {
    %c0_i32 = arith.constant 0 : i32
    %c0_i32_0 = arith.constant 0 : i32
    %c0_i32_1 = arith.constant 0 : i32
    return %c0_i32, %c0_i32_0 : i32, i32
  }
  func.func @transform_6(%arg0: i32) -> (i32, i32) {
    %c0_i32 = arith.constant 0 : i32
    %c0_i32_0 = arith.constant 0 : i32
    %c0_i32_1 = arith.constant 0 : i32
    return %c0_i32, %c0_i32_0 : i32, i32
  }
  func.func @transform_7(%arg0: i32) -> (i32, i32) {
    %c0_i32 = arith.constant 0 : i32
    %c0_i32_0 = arith.constant 0 : i32
    return %c0_i32, %arg0 : i32, i32
  }
}

</mosaic_0001>

<llo_original>
// kernel: mlp_forward.1
$region0: #{mlp_forward.1}
  #allocation0 [shape = 'u32[]', space=smem, size = 0x4, offset = 0x4, fixed_abs, tag = 'smem constant byte address 0x4 - core index']
  #allocation1 [shape = 'u32[72,128]{1,0:T(1,128)}', space=vmem, size = 0x9000, scoped, tag = 'internal scratch']
  %s0 = inlined_call_operand.vmem [shape: f32[16,24], index: 0, kind: input, shape index: {}]
  %s1 = inlined_call_operand.vmem [shape: f32[24,32], index: 1, kind: input, shape index: {}]
  %s2 = inlined_call_operand.vmem [shape: f32[1,32], index: 2, kind: input, shape index: {}]
  %s3 = inlined_call_operand.vmem [shape: f32[32,32], index: 3, kind: input, shape index: {}]
  %s4 = inlined_call_operand.vmem [shape: f32[1,32], index: 4, kind: input, shape index: {}]
  %s5 = inlined_call_operand.vmem [shape: f32[8,32], index: 5, kind: input, shape index: {}]
  %s6 = inlined_call_operand.vmem [shape: f32[8,1], index: 6, kind: input, shape index: {}]
  %s7 = inlined_call_operand.vmem [shape: f32[8,16], index: 7, kind: output, shape index: {}]
  %s8 = sld [smem:[#allocation0]]
  $region38: #{mlp_forward.1} parent=0
    _
  %s10 = ssub.s32 1, %s8
  %s11 = scalar_select 0, %s10, %s8
  // Predicated region
  $region2: #{mlp_forward.1} parent=0 // pred_check
    _
  $region3: #{mlp_forward.1} parent=0 // pred_check_branch
    %13 = sbr.rel (0) target = $region5
  $region4: #{mlp_forward.1} parent=0 // pred_region
    _
  $region5: #{mlp_forward.1} parent=0 // pred_fallthru
    _
  // Predicated region
  $region6: #{mlp_forward.1} parent=0 // pred_check
    _
  $region7: #{mlp_forward.1} parent=0 // pred_check_branch
    %15 = sbr.rel (0) target = $region9
  $region8: #{mlp_forward.1} parent=0 // pred_region
    _
  $region9: #{mlp_forward.1} parent=0 // pred_fallthru
    _
  // Predicated region
  $region10: #{mlp_forward.1} parent=0 // pred_check
    _
  $region11: #{mlp_forward.1} parent=0 // pred_check_branch
    %17 = sbr.rel (0) target = $region13
  $region12: #{mlp_forward.1} parent=0 // pred_region
    _
  $region13: #{mlp_forward.1} parent=0 // pred_fallthru
    _
  // Predicated region
  $region14: #{mlp_forward.1} parent=0 // pred_check
    _
  $region15: #{mlp_forward.1} parent=0 // pred_check_branch
    %19 = sbr.rel (0) target = $region17
  $region16: #{mlp_forward.1} parent=0 // pred_region
    _
  $region17: #{mlp_forward.1} parent=0 // pred_fallthru
    _
  // Predicated region
  $region18: #{mlp_forward.1} parent=0 // pred_check
    _
  $region19: #{mlp_forward.1} parent=0 // pred_check_branch
    %21 = sbr.rel (0) target = $region21
  $region20: #{mlp_forward.1} parent=0 // pred_region
    _
  $region21: #{mlp_forward.1} parent=0 // pred_fallthru
    _
  // Predicated region
  $region22: #{mlp_forward.1} parent=0 // pred_check
    _
  $region23: #{mlp_forward.1} parent=0 // pred_check_branch
    %23 = sbr.rel (0) target = $region25
  $region24: #{mlp_forward.1} parent=0 // pred_region
    _
  $region25: #{mlp_forward.1} parent=0 // pred_fallthru
    _
  // Predicated region
  $region26: #{mlp_forward.1} parent=0 // pred_check
    _
  $region27: #{mlp_forward.1} parent=0 // pred_check_branch
    %25 = sbr.rel (0) target = $region29
  $region28: #{mlp_forward.1} parent=0 // pred_region
    _
  $region29: #{mlp_forward.1} parent=0 // pred_fallthru
    _
  %v26 = vld [vmem:[%s0] sm:$0xff]
  %v27 = vld [vmem:[%s0 + $0x8] sm:$0xff]
  %v28 = vld [vmem:[%s1] sm:$0xff]
  %v29 = vld [vmem:[%s1 + $0x8] sm:$0xff]
  %v30 = vld [vmem:[%s1 + $0x10] sm:$0xff]
  %v31 = vld [vmem:[%s2] sm:$0x1]
  %v33 = vperm.slane %v31, 0
  %vm35 = vcmask 195584
  %v37 = vsel %vm35, %v26, 0
  %v40 = vsel %vm35, %v27, 0
  %42 = vmatpush.msra.mxu0 0.0
  %43 = vmatpush.msra.mxu0 0.0
  %44 = vmatpush.msra.mxu0 0.0
  %45 = vmatpush.msra.mxu0 0.0
  %46 = vmatpush.msra.mxu0 0.0
  %47 = vmatpush.msra.mxu0 0.0
  %48 = vmatpush.msra.mxu0 0.0
  %49 = vmatpush.msra.mxu0 0.0
  %50 = vmatpush.msra.mxu0 0.0
  %51 = vmatpush.msra.mxu0 0.0
  %52 = vmatpush.msra.mxu0 0.0
  %53 = vmatpush.msra.mxu0 0.0
  %54 = vmatpush.msra.mxu0 0.0
  %55 = vmatpush.msra.mxu0 %v30
  %56 = vmatpush.msra.mxu0 %v29
  %57 = vmatpush.msra.mxu0 %v28
  %58 = vmatmul.f32.gmra.mxu0 %v37
  %v59 = vpop.f32.mrf.mxu0
  %v60 = vadd.f32 %v33, %v59
  %61 = vmatmul.f32.gmra.mxu0 %v40
  %v62 = vpop.f32.mrf.mxu0
  %v63 = vadd.f32 %v33, %v62
  %64 = vdwg.mxu0
  %v65 = vmax.f32 %v60, 0.0
  %v66 = vmax.f32 %v63, 0.0
  %v67 = vld [vmem:[%s3] sm:$0xff]
  %v68 = vld [vmem:[%s3 + $0x8] sm:$0xff]
  %v69 = vld [vmem:[%s3 + $0x10] sm:$0xff]
  %v70 = vld [vmem:[%s3 + $0x18] sm:$0xff]
  %v71 = vld [vmem:[%s4] sm:$0x1]
  %v73 = vperm.slane %v71, 0
  %vm75 = vcmask 261120
  %v77 = vsel %vm75, %v65, 0
  %v80 = vsel %vm75, %v66, 0
  %82 = vmatpush.msra.mxu0 0.0
  %83 = vmatpush.msra.mxu0 0.0
  %84 = vmatpush.msra.mxu0 0.0
  %85 = vmatpush.msra.mxu0 0.0
  %86 = vmatpush.msra.mxu0 0.0
  %87 = vmatpush.msra.mxu0 0.0
  %88 = vmatpush.msra.mxu0 0.0
  %89 = vmatpush.msra.mxu0 0.0
  %90 = vmatpush.msra.mxu0 0.0
  %91 = vmatpush.msra.mxu0 0.0
  %92 = vmatpush.msra.mxu0 0.0
  %93 = vmatpush.msra.mxu0 0.0
  %94 = vmatpush.msra.mxu0 %v70
  %95 = vmatpush.msra.mxu0 %v69
  %96 = vmatpush.msra.mxu0 %v68
  %97 = vmatpush.msra.mxu0 %v67
  %98 = vmatmul.f32.gmra.mxu0 %v77
  %v99 = vpop.f32.mrf.mxu0
  %v100 = vadd.f32 %v73, %v99
  %101 = vmatmul.f32.gmra.mxu0 %v80
  %v102 = vpop.f32.mrf.mxu0
  %v103 = vadd.f32 %v73, %v102
  %104 = vdwg.mxu0
  %v105 = vmax.f32 %v100, 0.0
  %v106 = vmax.f32 %v103, 0.0
  %v107 = vld [vmem:[%s5] sm:$0xff]
  %v108 = vld [vmem:[%s6] sm:$0xff]
  %110 = vset.pattern.permute.xlu0 0
  %111 = vperm.xlu0 %110, %v108
  %v112 = vpop.permute.xlu0 %111
  %v115 = vsel %vm75, %v107, 0
  %v118 = vsel %vm75, %v105, 0
  %v121 = vsel %vm75, %v106, 0
  %123 = vmatpush.xpose.msra.mxu0 0.0
  %124 = vmatpush.xpose.msra.mxu0 0.0
  %125 = vmatpush.xpose.msra.mxu0 0.0
  %126 = vmatpush.xpose.msra.mxu0 0.0
  %127 = vmatpush.xpose.msra.mxu0 0.0
  %128 = vmatpush.xpose.msra.mxu0 0.0
  %129 = vmatpush.xpose.msra.mxu0 0.0
  %130 = vmatpush.xpose.msra.mxu0 0.0
  %131 = vmatpush.xpose.msra.mxu0 0.0
  %132 = vmatpush.xpose.msra.mxu0 0.0
  %133 = vmatpush.xpose.msra.mxu0 0.0
  %134 = vmatpush.xpose.msra.mxu0 0.0
  %135 = vmatpush.xpose.msra.mxu0 0.0
  %136 = vmatpush.xpose.msra.mxu0 0.0
  %137 = vmatpush.xpose.msra.mxu0 %v121
  %138 = vmatpush.xpose.msra.mxu0 %v118
  %139 = vmatmul.f32.gmra.mxu0 %v115
  %v140 = vpop.f32.mrf.mxu0
  %v141 = vadd.f32 %v112, %v140
  %142 = vdwg.mxu0
  %vm143 = vcmask 130048
  %144 = vst.msk [vmem:[%s7] sm:$0xff] %vm143, %v141
  // Predicated region
  $region30: #{mlp_forward.1} parent=0 // pred_check
    _
  $region31: #{mlp_forward.1} parent=0 // pred_check_branch
    %146 = sbr.rel (0) target = $region33
  $region32: #{mlp_forward.1} parent=0 // pred_region
    _
  $region33: #{mlp_forward.1} parent=0 // pred_fallthru
    _
  // Predicated region
  $region34: #{mlp_forward.1} parent=0 // pred_check
    _
  $region35: #{mlp_forward.1} parent=0 // pred_check_branch
    %148 = sbr.rel (0) target = $region37
  $region36: #{mlp_forward.1} parent=0 // pred_region
    _
  $region37: #{mlp_forward.1} parent=0 // pred_fallthru
    _

</llo_original>
